<compile_context>
chip_gen: v7x
topology: tpu7x:2x2x1
jax: 0.10.0
libtpu: 0.0.40
codegen_flags: <defaults>
</compile_context>

<pallas_src>
import jax
import jax.numpy as jnp
from jax.experimental import pallas as pl
from jax.experimental.pallas import tpu as pltpu

_LANES = 128
_TARGET_BLOCK_BYTES = 4 << 20   # ~4 MiB of DMA per input per grid step
_VMEM_LIMIT_BYTES = 32 << 20    # 2 inputs x 2 buffers x 4 MiB + headroom; <= physical on all gens


def _round_up(x, m):
    return ((x + m - 1) // m) * m


def _num_splits_for_device():
    # Two TensorCores per chip only on v7x; on single-TC chips a split axis only
    # adds clamp / duplicate-tile overhead.
    try:
        kind = jax.devices()[0].device_kind.lower()
    except Exception:
        return 1
    return 2 if "v7" in kind else 1


def mse_loss(pred, target):
    assert pred.shape == target.shape, "pred/target shape mismatch"
    n_elems = pred.size
    if n_elems == 0:
        return jnp.array(jnp.nan, dtype=pred.dtype)

    p = jnp.ravel(pred)
    t = jnp.ravel(target)

    # Lane alignment: run the kernel on the aligned prefix; fold the <128-elem
    # tail in with a tiny wrapper-side sum (no full-array pad copies).
    n_aligned = (n_elems // _LANES) * _LANES
    n_tail = n_elems - n_aligned

    tail_sum = None
    if n_tail:
        # TODO(synk): a manual-DMA 1-D tail path inside the kernel would also
        # avoid materializing the aligned-prefix slice for misaligned sizes.
        dp = p[n_aligned:].astype(jnp.float32) - t[n_aligned:].astype(jnp.float32)
        tail_sum = jnp.sum(dp * dp)

    if n_aligned == 0:
        return (tail_sum / float(n_elems)).astype(pred.dtype)

    rows = n_aligned // _LANES
    p2d = p[:n_aligned].reshape(rows, _LANES)
    t2d = t[:n_aligned].reshape(rows, _LANES)

    # Block sizing: keep per-step DMA bytes constant across dtypes.
    itemsize = max(p.dtype.itemsize, t.dtype.itemsize)
    max_block_rows = max(8, _TARGET_BLOCK_BYTES // (_LANES * itemsize))
    block_rows = min(max_block_rows, _round_up(rows, 8))
    n_tiles = -(-rows // block_rows)

    n_splits = min(_num_splits_for_device(), n_tiles)
    tiles_per_split = -(-n_tiles // n_splits)

    has_tail = (rows % block_rows) != 0                      # last tile is partial
    has_overshoot = (n_splits * tiles_per_split) != n_tiles  # uneven v7x split

    def kernel(p_ref, t_ref, o_ref):
        c = pl.program_id(0)
        j = pl.program_id(1)
        tile = c * tiles_per_split + j

        @pl.when(j == 0)
        def _():
            o_ref[...] = jnp.zeros_like(o_ref)

        def accumulate(mask_tail):
            d = p_ref[...].astype(jnp.float32) - t_ref[...].astype(jnp.float32)
            sq = d * d
            if mask_tail:
                row_ids = tile * block_rows + jax.lax.broadcasted_iota(
                    jnp.int32, (block_rows, _LANES), 0)
                # Keep this a select: the partial edge block's out-of-range rows
                # hold unspecified data that must be discarded, not scaled.
                sq = jnp.where(row_ids < rows, sq, 0.0)
            # Tile-aligned reshape -> pure VPU vreg adds down to an (8,128)
            # partial; the single cross-lane reduce happens once, in the wrapper.
            partial = jnp.sum(sq.reshape(block_rows // 8, 8, _LANES), axis=0)
            o_ref[...] += partial[None, :, :]

        if not has_tail and not has_overshoot:
            accumulate(False)
        else:
            # Full tiles stay on the unmasked fast path; only the last (possibly
            # partial) tile pays for iota/compare/select; overshoot steps on the
            # second v7x split (tile >= n_tiles) are skipped entirely.
            @pl.when(tile < n_tiles - 1)
            def _():
                accumulate(False)

            @pl.when(tile == n_tiles - 1)
            def _():
                accumulate(has_tail)

    if has_overshoot:
        def in_map(c, j):
            # Clamp so the (at most one) out-of-range step re-reads the same
            # block as the previous step on its split (its compute is skipped),
            # avoiding a redundant HBM fetch.
            return (jnp.minimum(c * tiles_per_split + j, n_tiles - 1), 0)
    else:
        def in_map(c, j):
            return (c * tiles_per_split + j, 0)

    cost = pl.CostEstimate(
        flops=3 * rows * _LANES,
        transcendentals=0,
        bytes_accessed=rows * _LANES * (p.dtype.itemsize + t.dtype.itemsize)
        + n_splits * 8 * _LANES * 4,
    )

    partial_sums = pl.pallas_call(
        kernel,
        out_shape=jax.ShapeDtypeStruct((n_splits, 8, _LANES), jnp.float32),
        grid=(n_splits, tiles_per_split),
        in_specs=[
            pl.BlockSpec((block_rows, _LANES), in_map),
            pl.BlockSpec((block_rows, _LANES), in_map),
        ],
        out_specs=pl.BlockSpec((1, 8, _LANES), lambda c, j: (c, 0, 0)),
        compiler_params=pltpu.CompilerParams(
            dimension_semantics=("parallel", "arbitrary"),
            vmem_limit_bytes=_VMEM_LIMIT_BYTES),
        cost_estimate=cost,
    )(p2d, t2d)

    total = jnp.sum(partial_sums)
    if tail_sum is not None:
        total = total + tail_sum
    return (total / float(n_elems)).astype(pred.dtype)


if __name__ == "__main__":
    key = jax.random.PRNGKey(0)
    keys = jax.random.split(key, 8)

    def ref_mse(p, t):
        pf = p.astype(jnp.float32)
        tf = t.astype(jnp.float32)
        return jnp.mean((pf - tf) ** 2)

    # 1) Lane-aligned f32 (single tile, unmasked fast path).
    pred = jax.random.normal(keys[0], (2, 4, 16, 16), dtype=jnp.float32)
    target = jax.random.normal(keys[1], (2, 4, 16, 16), dtype=jnp.float32)
    loss = mse_loss(pred, target)
    jax.block_until_ready(loss)
    assert jnp.allclose(loss, ref_mse(pred, target), rtol=2e-5, atol=1e-6), loss

    # 2) bf16 inputs (native-dtype streaming + in-kernel f32 upcast).
    pred_b = jax.random.normal(keys[2], (4, 8, 128), dtype=jnp.bfloat16)
    target_b = jax.random.normal(keys[3], (4, 8, 128), dtype=jnp.bfloat16)
    loss_b = mse_loss(pred_b, target_b)
    jax.block_until_ready(loss_b)
    assert jnp.allclose(loss_b.astype(jnp.float32), ref_mse(pred_b, target_b),
                        rtol=2e-2, atol=1e-2), loss_b

    # 3) Lane-misaligned: aligned-prefix kernel (ragged row mask) + wrapper tail.
    pred_m = jax.random.normal(keys[4], (3, 50, 3), dtype=jnp.float32)
    target_m = jax.random.normal(keys[5], (3, 50, 3), dtype=jnp.float32)
    loss_m = mse_loss(pred_m, target_m)
    jax.block_until_ready(loss_m)
    assert jnp.allclose(loss_m, ref_mse(pred_m, target_m), rtol=2e-5, atol=1e-6), loss_m

    # 4) Multi-tile with ragged last tile (and an uneven 2-way split on v7x).
    pred_l = jax.random.normal(keys[6], (3, 8100, 128), dtype=jnp.float32)
    target_l = jax.random.normal(keys[7], (3, 8100, 128), dtype=jnp.float32)
    loss_l = mse_loss(pred_l, target_l)
    jax.block_until_ready(loss_l)
    assert jnp.allclose(loss_l, ref_mse(pred_l, target_l), rtol=1e-4, atol=1e-6), loss_l

    print("KERNEL_OK")
</pallas_src>

<mosaic_0001>
module attributes {stable_mosaic.version = 11 : i64} {
  func.func @kernel(%arg0: i32, %arg1: i32, %arg2: memref<16x128xf32, #tpu.memory_space<vmem>>, %arg3: memref<16x128xf32, #tpu.memory_space<vmem>>, %arg4: memref<1x8x128xf32, #tpu.memory_space<vmem>>) attributes {dimension_semantics = [#tpu.dimension_semantics<parallel>, #tpu.dimension_semantics<arbitrary>], iteration_bounds = array<i64: 1, 1>, scalar_prefetch = 0 : i64, scratch_operands = 0 : i64, tpu.core_type = #tpu.core_type<tc>, window_params = [{transform_indices = @transform_0, window_bounds = array<i64: 16, 128>}, {transform_indices = @transform_1, window_bounds = array<i64: 16, 128>}, {transform_indices = @transform_2, window_bounds = array<i64: 1, 8, 128>}]} {
    %c0_i32 = arith.constant 0 : i32
    %0 = arith.cmpi eq, %arg1, %c0_i32 : i32
    %1 = arith.extui %0 : i1 to i32
    %c0_i32_0 = arith.constant 0 : i32
    %2 = arith.cmpi ne, %1, %c0_i32_0 : i32
    scf.if %2 {
      %cst_10 = arith.constant 0.000000e+00 : f32
      %13 = vector.broadcast %cst_10 : f32 to vector<1x8x128xf32>
      %c0_11 = arith.constant 0 : index
      %c0_12 = arith.constant 0 : index
      %c0_13 = arith.constant 0 : index
      %14 = vector.load %arg4[%c0_11, %c0_12, %c0_13] : memref<1x8x128xf32, #tpu.memory_space<vmem>>, vector<1x8x128xf32>
      tpu.vector_store %arg4[%c0_11, %c0_12, %c0_13], %13 {strides = array<i32>} : memref<1x8x128xf32, #tpu.memory_space<vmem>>, vector<1x8x128xf32>,
    } else {
    }
    %c0 = arith.constant 0 : index
    %c0_1 = arith.constant 0 : index
    %3 = vector.load %arg2[%c0, %c0_1] : memref<16x128xf32, #tpu.memory_space<vmem>>, vector<16x128xf32>
    %c0_2 = arith.constant 0 : index
    %c0_3 = arith.constant 0 : index
    %4 = vector.load %arg3[%c0_2, %c0_3] : memref<16x128xf32, #tpu.memory_space<vmem>>, vector<16x128xf32>
    %5 = arith.subf %3, %4 : vector<16x128xf32>
    %6 = arith.mulf %5, %5 : vector<16x128xf32>
    %7 = vector.shape_cast %6 : vector<16x128xf32> to vector<2x8x128xf32>
    %cst = arith.constant dense<0.000000e+00> : vector<8x128xf32>
    %8 = vector.multi_reduction <add>, %7, %cst [0] : vector<2x8x128xf32> to vector<8x128xf32>
    %c0_4 = arith.constant 0 : index
    %c0_5 = arith.constant 0 : index
    %c0_6 = arith.constant 0 : index
    %9 = vector.load %arg4[%c0_4, %c0_5, %c0_6] : memref<1x8x128xf32, #tpu.memory_space<vmem>>, vector<1x8x128xf32>
    %10 = vector.shape_cast %8 : vector<8x128xf32> to vector<1x8x128xf32>
    %11 = arith.addf %9, %10 : vector<1x8x128xf32>
    %c0_7 = arith.constant 0 : index
    %c0_8 = arith.constant 0 : index
    %c0_9 = arith.constant 0 : index
    %12 = vector.load %arg4[%c0_7, %c0_8, %c0_9] : memref<1x8x128xf32, #tpu.memory_space<vmem>>, vector<1x8x128xf32>
    tpu.vector_store %arg4[%c0_7, %c0_8, %c0_9], %11 {strides = array<i32>} : memref<1x8x128xf32, #tpu.memory_space<vmem>>, vector<1x8x128xf32>,
    return
  }
  func.func @transform_0(%arg0: i32, %arg1: i32) -> (i32, i32) {
    %c1_i32 = arith.constant 1 : i32
    %0 = arith.muli %arg0, %c1_i32 : i32
    %1 = arith.addi %0, %arg1 : i32
    %c0_i32 = arith.constant 0 : i32
    %c0_i32_0 = arith.constant 0 : i32
    return %1, %c0_i32 : i32, i32
  }
  func.func @transform_1(%arg0: i32, %arg1: i32) -> (i32, i32) {
    %c1_i32 = arith.constant 1 : i32
    %0 = arith.muli %arg0, %c1_i32 : i32
    %1 = arith.addi %0, %arg1 : i32
    %c0_i32 = arith.constant 0 : i32
    %c0_i32_0 = arith.constant 0 : i32
    return %1, %c0_i32 : i32, i32
  }
  func.func @transform_2(%arg0: i32, %arg1: i32) -> (i32, i32, i32) {
    %c0_i32 = arith.constant 0 : i32
    %c0_i32_0 = arith.constant 0 : i32
    %c0_i32_1 = arith.constant 0 : i32
    return %arg0, %c0_i32, %c0_i32_0 : i32, i32, i32
  }
}

</mosaic_0001>

<llo_original>
// kernel: tpu_custom_call.1
$region0: #{tpu_custom_call.1}
  #allocation0 [shape = 'u32[]', space=smem, size = 0x4, offset = 0x4, fixed_abs, tag = 'smem constant byte address 0x4 - core index']
  #allocation1 [shape = 'u32[144,128]{1,0:T(1,128)}', space=vmem, size = 0x12000, scoped, tag = 'internal scratch']
  %s0 = inlined_call_operand.hbm [shape: f32[16,128], index: 0, kind: input, shape index: {}]
  %s1 = inlined_call_operand.hbm [shape: f32[16,128], index: 1, kind: input, shape index: {}]
  %s2 = inlined_call_operand.hbm [shape: f32[1,8,128], index: 2, kind: output, shape index: {}]
  %s3 = sld [smem:[#allocation0]]
  $region30: #{tpu_custom_call.1} parent=0
    _
  %s5 = ssub.s32 1, %s3
  %s6 = scalar_select 0, %s5, %s3
  $region1: #{tpu_custom_call.1} parent=0
    #allocation2 [shape = 'u8[8192]{0}', space=vmem, size = 0x2000, scoped, tag = 'input window, operand 0, single buffered']
    #allocation3 [shape = 's32[1]{0}', space=sflag, size = 0x4, scoped, tag = 'scoped memory for tpu_custom_call.1']
    #allocation4 [shape = 's32[1]{0}', space=sflag, size = 0x4, scoped, tag = 'scoped memory for tpu_custom_call.1']
    #allocation5 [shape = 'u8[8192]{0}', space=vmem, size = 0x2000, scoped, tag = 'input window, operand 1, single buffered']
    #allocation6 [shape = 's32[1]{0}', space=sflag, size = 0x4, scoped, tag = 'scoped memory for tpu_custom_call.1']
    #allocation7 [shape = 'u8[4096]{0}', space=vmem, size = 0x1000, scoped, tag = 'output window, operand 0, single buffered']
    %7 = vsyncpa [#allocation3], 0
    %8 = vsyncpa [#allocation6], 0
    %9 = vsyncpa [#allocation4], 0
    // Predicated region
    $region2: #{tpu_custom_call.1} parent=1 // pred_check
      _
    $region3: #{tpu_custom_call.1} parent=1 // pred_check_branch
      %11 = sbr.rel (0) target = $region5
    $region4: #{tpu_custom_call.1} parent=1 // pred_region
      %s12 = sadd.s32 0, 0
      %s13 = smul.u32 2, %s12
      %s15 = ssub.s32 256, 256
      %16 = vsyncadd [#allocation3], %s15
      %s17 = smul.addr %s13, 128
      %s18 = scalar_lea.hbm %s0, %s17
      %s19 = sshll.u32 [#allocation2], 4
      %s20 = int_to_ptr.vmem [resolvable:$true] %s19
      %25 = dma.hbm_to_vmem [thread:$0]  %s18, 256, %s20, [#allocation3], 128, 128, 8
    $region5: #{tpu_custom_call.1} parent=1 // pred_fallthru
      _
    // Predicated region
    $region6: #{tpu_custom_call.1} parent=1 // pred_check
      _
    $region7: #{tpu_custom_call.1} parent=1 // pred_check_branch
      %27 = sbr.rel (0) target = $region9
    $region8: #{tpu_custom_call.1} parent=1 // pred_region
      %s28 = sadd.s32 0, 0
      %s29 = smul.u32 2, %s28
      %s31 = ssub.s32 256, 256
      %32 = vsyncadd [#allocation6], %s31
      %s33 = smul.addr %s29, 128
      %s34 = scalar_lea.hbm %s1, %s33
      %s35 = sshll.u32 [#allocation5], 4
      %s36 = int_to_ptr.vmem [resolvable:$true] %s35
      %41 = dma.hbm_to_vmem [thread:$0]  %s34, 256, %s36, [#allocation6], 128, 128, 8
    $region9: #{tpu_custom_call.1} parent=1 // pred_fallthru
      _
    // Predicated region
    $region10: #{tpu_custom_call.1} parent=1 // pred_check
      _
    $region11: #{tpu_custom_call.1} parent=1 // pred_check_branch
      %43 = sbr.rel (0) target = $region13
    $region12: #{tpu_custom_call.1} parent=1 // pred_region
      %44 = dma.done [#allocation3], 256
    $region13: #{tpu_custom_call.1} parent=1 // pred_fallthru
      _
    // Predicated region
    $region14: #{tpu_custom_call.1} parent=1 // pred_check
      _
    $region15: #{tpu_custom_call.1} parent=1 // pred_check_branch
      %46 = sbr.rel (0) target = $region17
    $region16: #{tpu_custom_call.1} parent=1 // pred_region
      %47 = dma.done [#allocation6], 256
    $region17: #{tpu_custom_call.1} parent=1 // pred_fallthru
      _
    %s48 = sadd.s32 0, 0
    %s49 = smul.u32 2, %s48
    %s50 = sadd.s32 0, 0
    %s51 = smul.u32 2, %s50
    %p52 = scmp.eq.s32.totalorder 0, 0
    // Predicated region
    $region18: #{tpu_custom_call.1} parent=1 // pred_check
      %p53 = pneg %p52
    $region19: #{tpu_custom_call.1} parent=1 // pred_check_branch
      %55 = sbr.rel (%p53) target = $region21
    $region20: #{tpu_custom_call.1} parent=1 // pred_region
      %56 = vst [vmem:[#allocation7] sm:$0xff] 0.0
    $region21: #{tpu_custom_call.1} parent=1 // pred_fallthru
      _
    %v57 = vld [vmem:[#allocation2] sm:$0xff]
    %v58 = vld [vmem:[#allocation2 + $0x8] sm:$0xff]
    %v59 = vld [vmem:[#allocation5] sm:$0xff]
    %v60 = vld [vmem:[#allocation5 + $0x8] sm:$0xff]
    %v61 = vsub.f32 %v57, %v59
    %v62 = vsub.f32 %v58, %v60
    %v63 = vmul.f32 %v61, %v61
    %v64 = vmul.f32 %v62, %v62
    %v65 = vadd.f32 %v63, %v64
    %v66 = vld [vmem:[#allocation7] sm:$0xff]
    %v67 = vadd.f32 %v66, %v65
    %68 = vst [vmem:[#allocation7] sm:$0xff] %v67
    // Predicated region
    $region22: #{tpu_custom_call.1} parent=1 // pred_check
      _
    $region23: #{tpu_custom_call.1} parent=1 // pred_check_branch
      %70 = sbr.rel (0) target = $region25
    $region24: #{tpu_custom_call.1} parent=1 // pred_region
      %s72 = ssub.s32 128, 128
      %73 = vsyncadd [#allocation4], %s72
      %s75 = sshll.u32 [#allocation7], 4
      %s76 = int_to_ptr.vmem [resolvable:$true] %s75
      %78 = dma.vmem_to_hbm [thread:$0]  %s76, 128, %s2, [#allocation4]
    $region25: #{tpu_custom_call.1} parent=1 // pred_fallthru
      _
    // Predicated region
    $region26: #{tpu_custom_call.1} parent=1 // pred_check
      _
    $region27: #{tpu_custom_call.1} parent=1 // pred_check_branch
      %80 = sbr.rel (0) target = $region29
    $region28: #{tpu_custom_call.1} parent=1 // pred_region
      %81 = dma.done [#allocation4], 128
    $region29: #{tpu_custom_call.1} parent=1 // pred_fallthru
      _
    %82 = vsyncpa [#allocation3], 1
    %83 = vsyncpa [#allocation6], 1
    %84 = vsyncpa [#allocation4], 1

</llo_original>
